<compile_context>
chip_gen: v7x
topology: tpu7x:2x2x1
jax: 0.10.0
libtpu: 0.0.40
codegen_flags: <defaults>
</compile_context>

<pallas_src>
import functools

import jax
import jax.numpy as jnp
from jax import lax
from jax.experimental import pallas as pl
from jax.experimental.pallas import tpu as pltpu


def _round_up(v, m):
    return -(-v // m) * m


def _tcn_kernel(x_ref, w1_ref, w2_ref, b_ref, m_ref, o_ref, *,
                K, d, N, C_out_p, cdt):
    # x_ref : (1, C_in_p, W_in)      batch tile; per-segment stride S (128-aligned),
    #                                each segment = [pad zeros | x_b | zeros], tail zeros.
    # w1_ref: (K+1, C_out_p, C_in_p) conv1 taps 0..K-1, tap K = 1x1 downsample weight.
    # w2_ref: (K,   C_out_p, C_out_p)
    # b_ref : (3, C_out_p, 1)        [b1, bd, b2], float32
    # m_ref : (1, N)                 segment-tail mask (zero where t_in_seg >= S - pad)
    # o_ref : (1, C_out_p, N)        valid output at columns [b*S, b*S + L)
    x = x_ref[0]                                              # (C_in_p, W_in), compute dtype

    # ---- conv1 (+ fused residual operand reuse): K accumulating MXU matmuls ----
    x_tap = x[:, 0:N]
    acc1 = jnp.dot(w1_ref[0], x_tap, preferred_element_type=jnp.float32)
    for k in range(1, K):
        x_tap = x[:, k * d: k * d + N]                        # one lane-shifted view per tap
        acc1 = acc1 + jnp.dot(w1_ref[k], x_tap, preferred_element_type=jnp.float32)
    # 1x1 downsample residual: last-tap view (offset == pad) is exactly un-padded x.
    res = jnp.dot(w1_ref[K], x_tap, preferred_element_type=jnp.float32) + b_ref[1]
    # chomp1 + relu1 (dropout = identity); mask segment tails once so conv2's right
    # shifts never pull data across the aligned segment seam.
    h = jnp.maximum(acc1 + b_ref[0], 0.0) * m_ref[...]        # (C_out_p, N) f32
    h_c = h.astype(cdt)

    # ---- conv2: causal left-pad realized as zero-fill right shifts of h ----
    acc2 = None
    for k in range(K):
        s = (K - 1 - k) * d                                   # right-shift == causal pad
        if s == 0:
            h_tap = h_c
        else:
            h_tap = jnp.concatenate(
                [jnp.zeros((C_out_p, s), jnp.float32), h[:, :N - s]],
                axis=1).astype(cdt)
        term = jnp.dot(w2_ref[k], h_tap, preferred_element_type=jnp.float32)
        acc2 = term if acc2 is None else acc2 + term
    out = jnp.maximum(acc2 + b_ref[2], 0.0)                   # chomp2 + relu2

    o_ref[0] = jnp.maximum(out + res, 0.0).astype(o_ref.dtype)


def _pick_batch_tile(B, C_in_p, C_out_p, S, cbytes, obytes):
    # Rough per-batch-segment VMEM bytes per grid step (double-buffered I/O + temporaries).
    per_b = S * (4 * C_in_p * cbytes                  # input block (x2 dbuf) + live tap view
                 + 2 * C_out_p * obytes               # output block (x2 dbuf)
                 + C_out_p * (4 * 4 + 3 * cbytes))    # f32 acc1/res/acc2/h + bf16 temps
    budget = 8 << 20
    bt_mem = max(1, budget // max(per_b, 1))
    bt_pipe = max(1, -(-B // 4))                      # aim for >= 4 grid steps when B allows
    return int(max(1, min(B, bt_mem, bt_pipe)))


def temporal_block_pallas(x, w1, b1, w2, b2, wd, bd, *, kernel_size, dilation,
                          batch_tile=None, compute_dtype=jnp.bfloat16):
    """x: (B, C_in, L). Weights are already weight-normalized (effective) values."""
    B, C_in, L = x.shape
    C_out = w1.shape[0]
    K = kernel_size
    d = dilation
    pad = (K - 1) * d                       # PyTorch padding == chomp size (causal conv)

    LANE, SUB = 128, 8
    C_in_p = _round_up(C_in, SUB)
    C_out_p = _round_up(C_out, SUB)
    S = _round_up(pad + L, LANE)            # lane-aligned per-batch segment stride
    E = _round_up(pad, LANE) if pad > 0 else 0   # tail so the largest tap shift stays in-bounds

    cbytes = jnp.dtype(compute_dtype).itemsize
    obytes = x.dtype.itemsize

    if batch_tile is None:
        Bt = _pick_batch_tile(B, C_in_p, C_out_p, S, cbytes, obytes)
    else:
        Bt = max(1, min(int(batch_tile), B))
    n_tiles = -(-B // Bt)
    Bpad = n_tiles * Bt
    N = Bt * S                              # matmul lane width == output block width
    W_in = N + E

    # ---- glue (wrapper-side XLA, once per call): pad / fold / cast ----
    xq = x.astype(compute_dtype)
    xq = jnp.pad(xq, ((0, Bpad - B), (0, C_in_p - C_in), (pad, S - pad - L)))
    xq = xq.reshape(n_tiles, Bt, C_in_p, S).transpose(0, 2, 1, 3).reshape(n_tiles, C_in_p, N)
    if E:
        xq = jnp.pad(xq, ((0, 0), (0, 0), (0, E)))                        # (n_tiles, C_in_p, W_in)

    w1s = jnp.concatenate([jnp.transpose(w1, (2, 0, 1)), wd[None]], axis=0)   # (K+1, C_out, C_in)
    w1s = jnp.pad(w1s, ((0, 0), (0, C_out_p - C_out), (0, C_in_p - C_in))).astype(compute_dtype)
    w2s = jnp.transpose(w2, (2, 0, 1))                                        # (K, C_out, C_out)
    w2s = jnp.pad(w2s, ((0, 0), (0, C_out_p - C_out), (0, C_out_p - C_out))).astype(compute_dtype)
    bs = jnp.stack([jnp.pad(b1, (0, C_out_p - C_out)),
                    jnp.pad(bd, (0, C_out_p - C_out)),
                    jnp.pad(b2, (0, C_out_p - C_out))]).astype(jnp.float32)[..., None]  # (3,C_out_p,1)

    limit = (S - pad) if pad > 0 else S
    tail_mask = ((jnp.arange(N, dtype=jnp.int32) % S) < limit).astype(jnp.float32)[None, :]

    # Explicit scoped-VMEM limit from the computed per-step footprint (with headroom).
    in_bytes = C_in_p * W_in * cbytes
    out_bytes = C_out_p * N * obytes
    w_bytes = ((K + 1) * C_out_p * C_in_p + K * C_out_p * C_out_p) * cbytes + 3 * C_out_p * 4
    tmp_bytes = N * (2 * C_in_p * cbytes + C_out_p * (4 * 4 + 3 * cbytes + 4))
    vmem_limit = int(min(max(2 * (in_bytes + out_bytes + w_bytes) + tmp_bytes + (4 << 20),
                             16 << 20), 64 << 20))

    kernel = functools.partial(_tcn_kernel, K=K, d=d, N=N, C_out_p=C_out_p, cdt=compute_dtype)

    out = pl.pallas_call(
        kernel,
        out_shape=jax.ShapeDtypeStruct((n_tiles, C_out_p, N), x.dtype),
        grid_spec=pltpu.PrefetchScalarGridSpec(
            num_scalar_prefetch=0,
            grid=(n_tiles,),
            in_specs=[
                pl.BlockSpec((1, C_in_p, W_in), lambda t: (t, 0, 0)),
                pl.BlockSpec((K + 1, C_out_p, C_in_p), lambda t: (0, 0, 0)),
                pl.BlockSpec((K, C_out_p, C_out_p), lambda t: (0, 0, 0)),
                pl.BlockSpec((3, C_out_p, 1), lambda t: (0, 0, 0)),
                pl.BlockSpec((1, N), lambda t: (0, 0)),
            ],
            out_specs=pl.BlockSpec((1, C_out_p, N), lambda t: (t, 0, 0)),
        ),
        compiler_params=pltpu.CompilerParams(
            dimension_semantics=("parallel",),
            vmem_limit_bytes=vmem_limit,
        ),
    )(xq, w1s, w2s, bs, tail_mask)

    # unfold lanes back to (B, C_out, L)
    out = out.reshape(n_tiles, C_out_p, Bt, S).transpose(0, 2, 1, 3).reshape(Bpad, C_out_p, S)
    return out[:B, :C_out, :L]


def weight_norm_effective(v, g):
    """PyTorch nn.utils.weight_norm (dim=0): w = g * v / ||v||, norm per out-channel."""
    norm = jnp.sqrt(jnp.sum(v * v, axis=(1, 2), keepdims=True))
    return g * v / norm


def reference_forward(x, w1, b1, w2, b2, wd, bd, *, padding, dilation):
    """Pure-JAX reference matching the PyTorch forward (eval mode)."""
    dn = ("NCH", "OIH", "NCH")
    y = lax.conv_general_dilated(x, w1, (1,), [(padding, padding)],
                                 rhs_dilation=(dilation,), dimension_numbers=dn)
    y = y + b1[None, :, None]
    y = y[:, :, :-padding] if padding > 0 else y
    y = jnp.maximum(y, 0.0)                                   # chomp1 + relu1
    y = lax.conv_general_dilated(y, w2, (1,), [(padding, padding)],
                                 rhs_dilation=(dilation,), dimension_numbers=dn)
    y = y + b2[None, :, None]
    y = y[:, :, :-padding] if padding > 0 else y
    y = jnp.maximum(y, 0.0)                                   # chomp2 + relu2
    res = lax.conv_general_dilated(x, wd[:, :, None], (1,), [(0, 0)],
                                   dimension_numbers=dn) + bd[None, :, None]
    return jnp.maximum(y + res, 0.0)


def _run_case(key, *, B, C_in, C_out, L, K, d):
    pad = (K - 1) * d
    ks = jax.random.split(key, 9)
    x = jax.random.normal(ks[0], (B, C_in, L), jnp.float32)
    v1 = 0.3 * jax.random.normal(ks[1], (C_out, C_in, K), jnp.float32)
    g1 = 0.5 + 0.1 * jax.random.normal(ks[2], (C_out, 1, 1), jnp.float32)
    b1 = 0.1 * jax.random.normal(ks[3], (C_out,), jnp.float32)
    v2 = 0.3 * jax.random.normal(ks[4], (C_out, C_out, K), jnp.float32)
    g2 = 0.5 + 0.1 * jax.random.normal(ks[5], (C_out, 1, 1), jnp.float32)
    b2 = 0.1 * jax.random.normal(ks[6], (C_out,), jnp.float32)
    wd = 0.3 * jax.random.normal(ks[7], (C_out, C_in), jnp.float32)
    bd = 0.1 * jax.random.normal(ks[8], (C_out,), jnp.float32)

    w1 = weight_norm_effective(v1, g1)
    w2 = weight_norm_effective(v2, g2)
    ref = reference_forward(x, w1, b1, w2, b2, wd, bd, padding=pad, dilation=d)

    # f32-operand path: tight correctness check.
    out32 = jax.block_until_ready(temporal_block_pallas(
        x, w1, b1, w2, b2, wd, bd, kernel_size=K, dilation=d,
        compute_dtype=jnp.float32))
    assert out32.shape == (B, C_out, L)
    err32 = jnp.max(jnp.abs(out32 - ref))
    assert jnp.allclose(out32, ref, atol=2e-4, rtol=2e-4), f"f32 mismatch: {err32}"

    # bf16-operand path (default / performance config): loose check.
    out16 = jax.block_until_ready(temporal_block_pallas(
        x, w1, b1, w2, b2, wd, bd, kernel_size=K, dilation=d))
    err16 = jnp.max(jnp.abs(out16 - ref))
    assert jnp.allclose(out16, ref, atol=7e-2, rtol=7e-2), f"bf16 mismatch: {err16}"


if __name__ == "__main__":
    key = jax.random.PRNGKey(0)
    k1, k2 = jax.random.split(key)
    # Small shapes consistent with the module (Conv1d on (N, C, L)).
    _run_case(k1, B=2, C_in=4, C_out=8, L=16, K=3, d=2)   # Bt=1 -> 2 grid steps
    _run_case(k2, B=5, C_in=3, C_out=6, L=40, K=2, d=1)   # channel/batch padding, Bt=2, 3 steps
    print("KERNEL_OK")
</pallas_src>

<mosaic_0001>
module attributes {stable_mosaic.version = 11 : i64} {
  func.func @_tcn_kernel(%arg0: i32, %arg1: memref<1x8x256xf32, #tpu.memory_space<vmem>>, %arg2: memref<4x8x8xf32, #tpu.memory_space<vmem>>, %arg3: memref<3x8x8xf32, #tpu.memory_space<vmem>>, %arg4: memref<3x8x1xf32, #tpu.memory_space<vmem>>, %arg5: memref<1x128xf32, #tpu.memory_space<vmem>>, %arg6: memref<1x8x128xf32, #tpu.memory_space<vmem>>) attributes {dimension_semantics = [#tpu.dimension_semantics<parallel>], iteration_bounds = array<i64: 2>, scalar_prefetch = 0 : i64, scratch_operands = 0 : i64, tpu.core_type = #tpu.core_type<tc>, window_params = [{transform_indices = @transform_0, window_bounds = array<i64: 1, 8, 256>}, {pipeline_mode = #tpu.pipeline_mode<synchronous>, transform_indices = @transform_1, window_bounds = array<i64: 4, 8, 8>}, {pipeline_mode = #tpu.pipeline_mode<synchronous>, transform_indices = @transform_2, window_bounds = array<i64: 3, 8, 8>}, {pipeline_mode = #tpu.pipeline_mode<synchronous>, transform_indices = @transform_3, window_bounds = array<i64: 3, 8, 1>}, {pipeline_mode = #tpu.pipeline_mode<synchronous>, transform_indices = @transform_4, window_bounds = array<i64: 1, 128>}, {transform_indices = @transform_5, window_bounds = array<i64: 1, 8, 128>}]} {
    %c0 = arith.constant 0 : index
    %c0_0 = arith.constant 0 : index
    %c0_1 = arith.constant 0 : index
    %0 = vector.load %arg1[%c0, %c0_0, %c0_1] : memref<1x8x256xf32, #tpu.memory_space<vmem>>, vector<1x8x256xf32>
    %1 = vector.shape_cast %0 : vector<1x8x256xf32> to vector<8x256xf32>
    %2 = vector.extract_strided_slice %1 {offsets = [0, 0], sizes = [8, 128], strides = [1, 1]} : vector<8x256xf32> to vector<8x128xf32>
    %c0_2 = arith.constant 0 : index
    %c0_3 = arith.constant 0 : index
    %c0_4 = arith.constant 0 : index
    %3 = vector.load %arg2[%c0_2, %c0_3, %c0_4] : memref<4x8x8xf32, #tpu.memory_space<vmem>>, vector<1x8x8xf32>
    %4 = vector.shape_cast %3 : vector<1x8x8xf32> to vector<8x8xf32>
    %cst = arith.constant dense<0.000000e+00> : vector<8x128xf32>
    %5 = tpu.matmul %4, %2, %cst {dimension_numbers = #tpu.dot_dimension_numbers<[1], [0], [0], [1], [0, 0, 1, 1], [], []>} : vector<8x8xf32>, vector<8x128xf32>, vector<8x128xf32> -> vector<8x128xf32>
    %6 = vector.extract_strided_slice %1 {offsets = [0, 2], sizes = [8, 128], strides = [1, 1]} : vector<8x256xf32> to vector<8x128xf32>
    %c1 = arith.constant 1 : index
    %c0_5 = arith.constant 0 : index
    %c0_6 = arith.constant 0 : index
    %7 = vector.load %arg2[%c1, %c0_5, %c0_6] : memref<4x8x8xf32, #tpu.memory_space<vmem>>, vector<1x8x8xf32>
    %8 = vector.shape_cast %7 : vector<1x8x8xf32> to vector<8x8xf32>
    %cst_7 = arith.constant dense<0.000000e+00> : vector<8x128xf32>
    %9 = tpu.matmul %8, %6, %cst_7 {dimension_numbers = #tpu.dot_dimension_numbers<[1], [0], [0], [1], [0, 0, 1, 1], [], []>} : vector<8x8xf32>, vector<8x128xf32>, vector<8x128xf32> -> vector<8x128xf32>
    %10 = arith.addf %5, %9 : vector<8x128xf32>
    %11 = vector.extract_strided_slice %1 {offsets = [0, 4], sizes = [8, 128], strides = [1, 1]} : vector<8x256xf32> to vector<8x128xf32>
    %c2 = arith.constant 2 : index
    %c0_8 = arith.constant 0 : index
    %c0_9 = arith.constant 0 : index
    %12 = vector.load %arg2[%c2, %c0_8, %c0_9] : memref<4x8x8xf32, #tpu.memory_space<vmem>>, vector<1x8x8xf32>
    %13 = vector.shape_cast %12 : vector<1x8x8xf32> to vector<8x8xf32>
    %cst_10 = arith.constant dense<0.000000e+00> : vector<8x128xf32>
    %14 = tpu.matmul %13, %11, %cst_10 {dimension_numbers = #tpu.dot_dimension_numbers<[1], [0], [0], [1], [0, 0, 1, 1], [], []>} : vector<8x8xf32>, vector<8x128xf32>, vector<8x128xf32> -> vector<8x128xf32>
    %15 = arith.addf %10, %14 : vector<8x128xf32>
    %c3 = arith.constant 3 : index
    %c0_11 = arith.constant 0 : index
    %c0_12 = arith.constant 0 : index
    %16 = vector.load %arg2[%c3, %c0_11, %c0_12] : memref<4x8x8xf32, #tpu.memory_space<vmem>>, vector<1x8x8xf32>
    %17 = vector.shape_cast %16 : vector<1x8x8xf32> to vector<8x8xf32>
    %cst_13 = arith.constant dense<0.000000e+00> : vector<8x128xf32>
    %18 = tpu.matmul %17, %11, %cst_13 {dimension_numbers = #tpu.dot_dimension_numbers<[1], [0], [0], [1], [0, 0, 1, 1], [], []>} : vector<8x8xf32>, vector<8x128xf32>, vector<8x128xf32> -> vector<8x128xf32>
    %c1_14 = arith.constant 1 : index
    %c0_15 = arith.constant 0 : index
    %c0_16 = arith.constant 0 : index
    %19 = vector.load %arg4[%c1_14, %c0_15, %c0_16] : memref<3x8x1xf32, #tpu.memory_space<vmem>>, vector<1x8x1xf32>
    %20 = vector.shape_cast %19 : vector<1x8x1xf32> to vector<8x1xf32>
    %21 = vector.broadcast %20 : vector<8x1xf32> to vector<8x128xf32>
    %22 = arith.addf %18, %21 : vector<8x128xf32>
    %c0_17 = arith.constant 0 : index
    %c0_18 = arith.constant 0 : index
    %c0_19 = arith.constant 0 : index
    %23 = vector.load %arg4[%c0_17, %c0_18, %c0_19] : memref<3x8x1xf32, #tpu.memory_space<vmem>>, vector<1x8x1xf32>
    %24 = vector.shape_cast %23 : vector<1x8x1xf32> to vector<8x1xf32>
    %25 = vector.broadcast %24 : vector<8x1xf32> to vector<8x128xf32>
    %26 = arith.addf %15, %25 : vector<8x128xf32>
    %cst_20 = arith.constant 0.000000e+00 : f32
    %27 = vector.broadcast %cst_20 : f32 to vector<8x128xf32>
    %28 = arith.maximumf %26, %27 : vector<8x128xf32>
    %c0_21 = arith.constant 0 : index
    %c0_22 = arith.constant 0 : index
    %29 = vector.load %arg5[%c0_21, %c0_22] : memref<1x128xf32, #tpu.memory_space<vmem>>, vector<1x128xf32>
    %30 = vector.broadcast %29 : vector<1x128xf32> to vector<8x128xf32>
    %31 = arith.mulf %28, %30 : vector<8x128xf32>
    %cst_23 = arith.constant 0.000000e+00 : f32
    %32 = vector.broadcast %cst_23 : f32 to vector<8x4xf32>
    %33 = vector.extract_strided_slice %31 {offsets = [0, 0], sizes = [8, 124], strides = [1, 1]} : vector<8x128xf32> to vector<8x124xf32>
    %34 = tpu.concatenate %32, %33 in 1 : vector<8x4xf32>, vector<8x124xf32> -> vector<8x128xf32>
    %c0_24 = arith.constant 0 : index
    %c0_25 = arith.constant 0 : index
    %c0_26 = arith.constant 0 : index
    %35 = vector.load %arg3[%c0_24, %c0_25, %c0_26] : memref<3x8x8xf32, #tpu.memory_space<vmem>>, vector<1x8x8xf32>
    %36 = vector.shape_cast %35 : vector<1x8x8xf32> to vector<8x8xf32>
    %cst_27 = arith.constant dense<0.000000e+00> : vector<8x128xf32>
    %37 = tpu.matmul %36, %34, %cst_27 {dimension_numbers = #tpu.dot_dimension_numbers<[1], [0], [0], [1], [0, 0, 1, 1], [], []>} : vector<8x8xf32>, vector<8x128xf32>, vector<8x128xf32> -> vector<8x128xf32>
    %cst_28 = arith.constant 0.000000e+00 : f32
    %38 = vector.broadcast %cst_28 : f32 to vector<8x2xf32>
    %39 = vector.extract_strided_slice %31 {offsets = [0, 0], sizes = [8, 126], strides = [1, 1]} : vector<8x128xf32> to vector<8x126xf32>
    %40 = tpu.concatenate %38, %39 in 1 : vector<8x2xf32>, vector<8x126xf32> -> vector<8x128xf32>
    %c1_29 = arith.constant 1 : index
    %c0_30 = arith.constant 0 : index
    %c0_31 = arith.constant 0 : index
    %41 = vector.load %arg3[%c1_29, %c0_30, %c0_31] : memref<3x8x8xf32, #tpu.memory_space<vmem>>, vector<1x8x8xf32>
    %42 = vector.shape_cast %41 : vector<1x8x8xf32> to vector<8x8xf32>
    %cst_32 = arith.constant dense<0.000000e+00> : vector<8x128xf32>
    %43 = tpu.matmul %42, %40, %cst_32 {dimension_numbers = #tpu.dot_dimension_numbers<[1], [0], [0], [1], [0, 0, 1, 1], [], []>} : vector<8x8xf32>, vector<8x128xf32>, vector<8x128xf32> -> vector<8x128xf32>
    %44 = arith.addf %37, %43 : vector<8x128xf32>
    %c2_33 = arith.constant 2 : index
    %c0_34 = arith.constant 0 : index
    %c0_35 = arith.constant 0 : index
    %45 = vector.load %arg3[%c2_33, %c0_34, %c0_35] : memref<3x8x8xf32, #tpu.memory_space<vmem>>, vector<1x8x8xf32>
    %46 = vector.shape_cast %45 : vector<1x8x8xf32> to vector<8x8xf32>
    %cst_36 = arith.constant dense<0.000000e+00> : vector<8x128xf32>
    %47 = tpu.matmul %46, %31, %cst_36 {dimension_numbers = #tpu.dot_dimension_numbers<[1], [0], [0], [1], [0, 0, 1, 1], [], []>} : vector<8x8xf32>, vector<8x128xf32>, vector<8x128xf32> -> vector<8x128xf32>
    %48 = arith.addf %44, %47 : vector<8x128xf32>
    %c2_37 = arith.constant 2 : index
    %c0_38 = arith.constant 0 : index
    %c0_39 = arith.constant 0 : index
    %49 = vector.load %arg4[%c2_37, %c0_38, %c0_39] : memref<3x8x1xf32, #tpu.memory_space<vmem>>, vector<1x8x1xf32>
    %50 = vector.shape_cast %49 : vector<1x8x1xf32> to vector<8x1xf32>
    %51 = vector.broadcast %50 : vector<8x1xf32> to vector<8x128xf32>
    %52 = arith.addf %48, %51 : vector<8x128xf32>
    %cst_40 = arith.constant 0.000000e+00 : f32
    %53 = vector.broadcast %cst_40 : f32 to vector<8x128xf32>
    %54 = arith.maximumf %52, %53 : vector<8x128xf32>
    %55 = arith.addf %54, %22 : vector<8x128xf32>
    %cst_41 = arith.constant 0.000000e+00 : f32
    %56 = vector.broadcast %cst_41 : f32 to vector<8x128xf32>
    %57 = arith.maximumf %55, %56 : vector<8x128xf32>
    %c0_42 = arith.constant 0 : index
    %c0_43 = arith.constant 0 : index
    %c0_44 = arith.constant 0 : index
    %58 = vector.load %arg6[%c0_42, %c0_43, %c0_44] : memref<1x8x128xf32, #tpu.memory_space<vmem>>, vector<1x8x128xf32>
    %59 = vector.shape_cast %58 : vector<1x8x128xf32> to vector<8x128xf32>
    %60 = vector.shape_cast %57 : vector<8x128xf32> to vector<1x8x128xf32>
    tpu.vector_store %arg6[%c0_42, %c0_43, %c0_44], %60 {strides = array<i32>} : memref<1x8x128xf32, #tpu.memory_space<vmem>>, vector<1x8x128xf32>,
    return
  }
  func.func @transform_0(%arg0: i32) -> (i32, i32, i32) {
    %c0_i32 = arith.constant 0 : i32
    %c0_i32_0 = arith.constant 0 : i32
    %c0_i32_1 = arith.constant 0 : i32
    return %arg0, %c0_i32, %c0_i32_0 : i32, i32, i32
  }
  func.func @transform_1(%arg0: i32) -> (i32, i32, i32) {
    %c0_i32 = arith.constant 0 : i32
    %c0_i32_0 = arith.constant 0 : i32
    %c0_i32_1 = arith.constant 0 : i32
    %c0_i32_2 = arith.constant 0 : i32
    return %c0_i32, %c0_i32_0, %c0_i32_1 : i32, i32, i32
  }
  func.func @transform_2(%arg0: i32) -> (i32, i32, i32) {
    %c0_i32 = arith.constant 0 : i32
    %c0_i32_0 = arith.constant 0 : i32
    %c0_i32_1 = arith.constant 0 : i32
    %c0_i32_2 = arith.constant 0 : i32
    return %c0_i32, %c0_i32_0, %c0_i32_1 : i32, i32, i32
  }
  func.func @transform_3(%arg0: i32) -> (i32, i32, i32) {
    %c0_i32 = arith.constant 0 : i32
    %c0_i32_0 = arith.constant 0 : i32
    %c0_i32_1 = arith.constant 0 : i32
    %c0_i32_2 = arith.constant 0 : i32
    return %c0_i32, %c0_i32_0, %c0_i32_1 : i32, i32, i32
  }
  func.func @transform_4(%arg0: i32) -> (i32, i32) {
    %c0_i32 = arith.constant 0 : i32
    %c0_i32_0 = arith.constant 0 : i32
    %c0_i32_1 = arith.constant 0 : i32
    return %c0_i32, %c0_i32_0 : i32, i32
  }
  func.func @transform_5(%arg0: i32) -> (i32, i32, i32) {
    %c0_i32 = arith.constant 0 : i32
    %c0_i32_0 = arith.constant 0 : i32
    %c0_i32_1 = arith.constant 0 : i32
    return %arg0, %c0_i32, %c0_i32_0 : i32, i32, i32
  }
}

</mosaic_0001>

<llo_original>
// kernel: tpu_custom_call.1
$region0: #{tpu_custom_call.1}
  #allocation0 [shape = 'u32[]', space=smem, size = 0x4, offset = 0x4, fixed_abs, tag = 'smem constant byte address 0x4 - core index']
  #allocation1 [shape = 'u32[144,128]{1,0:T(1,128)}', space=vmem, size = 0x12000, scoped, tag = 'internal scratch']
  %s0 = inlined_call_operand.hbm [shape: f32[2,8,256], index: 0, kind: input, shape index: {}]
  %s1 = inlined_call_operand.hbm [shape: f32[4,8,8], index: 1, kind: input, shape index: {}]
  %s2 = inlined_call_operand.vmem [shape: f32[3,8,8], index: 2, kind: input, shape index: {}]
  %s3 = inlined_call_operand.vmem [shape: f32[3,8,1], index: 3, kind: input, shape index: {}]
  %s4 = inlined_call_operand.vmem [shape: f32[1,128], index: 4, kind: input, shape index: {}]
  %s5 = inlined_call_operand.hbm [shape: f32[2,8,128], index: 5, kind: output, shape index: {}]
  %s6 = sld [smem:[#allocation0]]
  $region61: #{tpu_custom_call.1} parent=0
    _
  %s8 = ssub.s32 1, %s6
  %s9 = scalar_select 0, %s8, %s6
  $region1: #{tpu_custom_call.1} parent=0
    #allocation2 [shape = 'u8[16384]{0}', space=vmem, size = 0x4000, scoped, tag = 'input window, operand 0']
    #allocation3 [shape = 's32[2]{0}', space=sflag, size = 0x8, scoped, tag = 'scoped memory for tpu_custom_call.1']
    #allocation4 [shape = 's32[2]{0}', space=sflag, size = 0x8, scoped, tag = 'scoped memory for tpu_custom_call.1']
    #allocation5 [shape = 'u8[16384]{0}', space=vmem, size = 0x4000, scoped, tag = 'input window, operand 1, single buffered']
    #allocation6 [shape = 's32[1]{0}', space=sflag, size = 0x4, scoped, tag = 'scoped memory for tpu_custom_call.1']
    #allocation7 [shape = 'u8[8192]{0}', space=vmem, size = 0x2000, scoped, tag = 'output window, operand 0']
    %10 = vsyncpa [#allocation3], 0
    %s11 = scalar_lea.sflag [#allocation3], 1
    %12 = vsyncpa %s11, 0
    %13 = vsyncpa [#allocation6], 0
    %14 = vsyncpa [#allocation4], 0
    %s15 = scalar_lea.sflag [#allocation4], 1
    %16 = vsyncpa %s15, 0
    loop: start=0, step=1, limit=4
    $region2: #{tpu_custom_call.1} parent=1 // loop_pre_header
      _
    $region3: #{tpu_custom_call.1} parent=1 // loop_header
      %s18 = sphi 0, %s22
      %p19 = scmp.ge.s32.totalorder %s18, 4
      %s28 = sphi 0, %s30
      %s31 = sphi 0, %s28
      %s32 = sphi 0, %s31
      %s48 = sphi 0, %s32
      %s52 = sphi 0, %s52
      %s54 = sphi 0, %s52
      %s55 = sphi 0, %s54
      %s69 = sphi 0, %s55
      %s73 = sphi 0, %s73
      %s75 = sphi 0, %s73
      %s76 = sphi 0, %s75
      %s90 = sphi 0, %s76
      %s94 = sphi 0, %s94
      %s96 = sphi 0, %s94
      %s97 = sphi 0, %s96
      %s111 = sphi 0, %s97
      %s115 = sphi 0, %s115
      %s117 = sphi 0, %s115
      %s118 = sphi 0, %s117
      %s132 = sphi 0, %s118
      %s138 = sphi 0, %s140
      %s141 = sphi 0, %s138
      %s142 = sphi 0, %s141
      %s158 = sphi 0, %s142
    $region4: #{tpu_custom_call.1} parent=1 // loop_header_branch
      %21 = sbr.rel (%p19) target = $region8
    $region5: #{tpu_custom_call.1} parent=1 // loop_body
      %s23 = ssub.s32 %s18, 1
      %s24 = ssub.s32 %s18, 2
      %s25 = sadd.s32 %s18, 1
      %s26 = ssub.s32 %s18, %s25
      %p27 = scmp.eq.s32.totalorder %s26, 0
      %s29 = sadd.s32 %s28, 1
      %s30 = scalar_select %p27, %s28, %s29
      %p33 = pneg %p27
      %p34 = scmp.eq.s32.totalorder %s18, 1
      %p35 = por %p33, %p34
      %p36 = scmp.ne.s32.totalorder %s28, %s31
      %p37 = scmp.eq.s32.totalorder %s18, 0
      %p38 = por %p36, %p37
      %p39 = scmp.ne.s32.totalorder %s28, %s31
      %p40 = scmp.eq.s32.totalorder %s23, 1
      %p41 = por %p39, %p40
      %p42 = scmp.ne.s32.totalorder %s31, %s32
      %p43 = scmp.eq.s32.totalorder %s23, 0
      %p44 = por %p42, %p43
      %p45 = scmp.ne.s32.totalorder %s31, %s32
      %p46 = scmp.eq.s32.totalorder %s24, 1
      %p47 = por %p45, %p46
      %p49 = scmp.ne.s32.totalorder %s32, %s48
      %p50 = scmp.eq.s32.totalorder %s24, 0
      %p51 = por %p49, %p50
      %s53 = sadd.s32 %s52, 1
      %p56 = scmp.eq.s32.totalorder %s18, 1
      %p57 = scmp.ne.s32.totalorder %s52, %s54
      %p58 = scmp.eq.s32.totalorder %s18, 0
      %p59 = por %p57, %p58
      %p60 = scmp.ne.s32.totalorder %s52, %s54
      %p61 = scmp.eq.s32.totalorder %s23, 1
      %p62 = por %p60, %p61
      %p63 = scmp.ne.s32.totalorder %s54, %s55
      %p64 = scmp.eq.s32.totalorder %s23, 0
      %p65 = por %p63, %p64
      %p66 = scmp.ne.s32.totalorder %s54, %s55
      %p67 = scmp.eq.s32.totalorder %s24, 1
      %p68 = por %p66, %p67
      %p70 = scmp.ne.s32.totalorder %s55, %s69
      %p71 = scmp.eq.s32.totalorder %s24, 0
      %p72 = por %p70, %p71
      %s74 = sadd.s32 %s73, 1
      %p77 = scmp.eq.s32.totalorder %s18, 1
      %p78 = scmp.ne.s32.totalorder %s73, %s75
      %p79 = scmp.eq.s32.totalorder %s18, 0
      %p80 = por %p78, %p79
      %p81 = scmp.ne.s32.totalorder %s73, %s75
      %p82 = scmp.eq.s32.totalorder %s23, 1
      %p83 = por %p81, %p82
      %p84 = scmp.ne.s32.totalorder %s75, %s76
      %p85 = scmp.eq.s32.totalorder %s23, 0
      %p86 = por %p84, %p85
      %p87 = scmp.ne.s32.totalorder %s75, %s76
      %p88 = scmp.eq.s32.totalorder %s24, 1
      %p89 = por %p87, %p88
      %p91 = scmp.ne.s32.totalorder %s76, %s90
      %p92 = scmp.eq.s32.totalorder %s24, 0
      %p93 = por %p91, %p92
      %s95 = sadd.s32 %s94, 1
      %p98 = scmp.eq.s32.totalorder %s18, 1
      %p99 = scmp.ne.s32.totalorder %s94, %s96
      %p100 = scmp.eq.s32.totalorder %s18, 0
      %p101 = por %p99, %p100
      %p102 = scmp.ne.s32.totalorder %s94, %s96
      %p103 = scmp.eq.s32.totalorder %s23, 1
      %p104 = por %p102, %p103
      %p105 = scmp.ne.s32.totalorder %s96, %s97
      %p106 = scmp.eq.s32.totalorder %s23, 0
      %p107 = por %p105, %p106
      %p108 = scmp.ne.s32.totalorder %s96, %s97
      %p109 = scmp.eq.s32.totalorder %s24, 1
      %p110 = por %p108, %p109
      %p112 = scmp.ne.s32.totalorder %s97, %s111
      %p113 = scmp.eq.s32.totalorder %s24, 0
      %p114 = por %p112, %p113
      %s116 = sadd.s32 %s115, 1
      %p119 = scmp.eq.s32.totalorder %s18, 1
      %p120 = scmp.ne.s32.totalorder %s115, %s117
      %p121 = scmp.eq.s32.totalorder %s18, 0
      %p122 = por %p120, %p121
      %p123 = scmp.ne.s32.totalorder %s115, %s117
      %p124 = scmp.eq.s32.totalorder %s23, 1
      %p125 = por %p123, %p124
      %p126 = scmp.ne.s32.totalorder %s117, %s118
      %p127 = scmp.eq.s32.totalorder %s23, 0
      %p128 = por %p126, %p127
      %p129 = scmp.ne.s32.totalorder %s117, %s118
      %p130 = scmp.eq.s32.totalorder %s24, 1
      %p131 = por %p129, %p130
      %p133 = scmp.ne.s32.totalorder %s118, %s132
      %p134 = scmp.eq.s32.totalorder %s24, 0
      %p135 = por %p133, %p134
      %s136 = ssub.s32 %s18, %s25
      %p137 = scmp.eq.s32.totalorder %s136, 0
      %s139 = sadd.s32 %s138, 1
      %s140 = scalar_select %p137, %s138, %s139
      %p143 = pneg %p137
      %p144 = scmp.eq.s32.totalorder %s18, 1
      %p145 = por %p143, %p144
      %p146 = scmp.ne.s32.totalorder %s138, %s141
      %p147 = scmp.eq.s32.totalorder %s18, 0
      %p148 = por %p146, %p147
      %p149 = scmp.ne.s32.totalorder %s138, %s141
      %p150 = scmp.eq.s32.totalorder %s23, 1
      %p151 = por %p149, %p150
      %p152 = scmp.ne.s32.totalorder %s141, %s142
      %p153 = scmp.eq.s32.totalorder %s23, 0
      %p154 = por %p152, %p153
      %p155 = scmp.ne.s32.totalorder %s141, %s142
      %p156 = scmp.eq.s32.totalorder %s24, 1
      %p157 = por %p155, %p156
      %p159 = scmp.ne.s32.totalorder %s142, %s158
      %p160 = scmp.eq.s32.totalorder %s24, 0
      %p161 = por %p159, %p160
      %p162 = scmp.le.s32.totalorder 1, %s18
      %p163 = scmp.lt.s32.totalorder %s18, 3
      %p164 = pnand %p162, %p163
      %p165 = pneg %p164
      // Predicated region
      $region9: #{tpu_custom_call.1} parent=5 // pred_check
        _
      $region10: #{tpu_custom_call.1} parent=5 // pred_check_branch
        %167 = sbr.rel (%p164) target = $region12
      $region11: #{tpu_custom_call.1} parent=5 // pred_region
        %s168 = ssub.s32 %s18, 1
        // Predicated region
        $region13: #{tpu_custom_call.1} parent=11 // pred_check
          %p169 = pneg %p65
        $region14: #{tpu_custom_call.1} parent=11 // pred_check_branch
          %171 = sbr.rel (%p169) target = $region16
        $region15: #{tpu_custom_call.1} parent=11 // pred_region
          %s173 = ssub.s32 512, 512
          %174 = vsyncadd [#allocation6], %s173
          %s175 = sshll.u32 [#allocation5], 4
          %s176 = int_to_ptr.vmem [resolvable:$true] %s175
          %181 = dma.hbm_to_vmem [thread:$0]  %s1, 512, %s176, [#allocation6], 128, 128, 8
        $region16: #{tpu_custom_call.1} parent=11 // pred_fallthru
          _
        // Predicated region
        $region17: #{tpu_custom_call.1} parent=11 // pred_check
          %p182 = pneg %p86
        $region18: #{tpu_custom_call.1} parent=11 // pred_check_branch
          %184 = sbr.rel (%p182) target = $region20
        $region19: #{tpu_custom_call.1} parent=11 // pred_region
          _
        $region20: #{tpu_custom_call.1} parent=11 // pred_fallthru
          _
        // Predicated region
        $region21: #{tpu_custom_call.1} parent=11 // pred_check
          %p185 = pneg %p107
        $region22: #{tpu_custom_call.1} parent=11 // pred_check_branch
          %187 = sbr.rel (%p185) target = $region24
        $region23: #{tpu_custom_call.1} parent=11 // pred_region
          _
        $region24: #{tpu_custom_call.1} parent=11 // pred_fallthru
          _
        // Predicated region
        $region25: #{tpu_custom_call.1} parent=11 // pred_check
          %p188 = pneg %p128
        $region26: #{tpu_custom_call.1} parent=11 // pred_check_branch
          %190 = sbr.rel (%p188) target = $region28
        $region27: #{tpu_custom_call.1} parent=11 // pred_region
          _
        $region28: #{tpu_custom_call.1} parent=11 // pred_fallthru
          _
      $region12: #{tpu_custom_call.1} parent=5 // pred_fallthru
        _
      %p191 = scmp.lt.s32.totalorder %s18, 2
      // Predicated region
      $region29: #{tpu_custom_call.1} parent=5 // pred_check
        %p192 = pneg %p191
      $region30: #{tpu_custom_call.1} parent=5 // pred_check_branch
        %194 = sbr.rel (%p192) target = $region32
      $region31: #{tpu_custom_call.1} parent=5 // pred_region
        // Predicated region
        $region33: #{tpu_custom_call.1} parent=31 // pred_check
          %p195 = pneg %p38
        $region34: #{tpu_custom_call.1} parent=31 // pred_check_branch
          %197 = sbr.rel (%p195) target = $region36
        $region35: #{tpu_custom_call.1} parent=31 // pred_region
          %s198 = sand.u32 %s28, 1
          %s199 = scalar_lea.sflag [#allocation3], %s198
          %s200 = sand.u32 %s28, 1
          %s201 = smul.addr %s200, 16
          %s202 = scalar_lea.vmem [#allocation2], %s201
          %s204 = ssub.s32 256, 256
          %205 = vsyncadd %s199, %s204
          %s206 = smul.addr %s18, 2
          %s207 = smul.addr %s206, 128
          %s208 = scalar_lea.hbm %s0, %s207
          %s210 = sshll.u32 %s202, 4
          %s211 = int_to_ptr.vmem [resolvable:$true] %s210
          %213 = dma.hbm_to_vmem [thread:$0]  %s208, 256, %s211, %s199
        $region36: #{tpu_custom_call.1} parent=31 // pred_fallthru
          _
      $region32: #{tpu_custom_call.1} parent=5 // pred_fallthru
        _
      %p214 = scmp.le.s32.totalorder 1, %s18
      %p215 = scmp.lt.s32.totalorder %s18, 3
      %p216 = pnand %p214, %p215
      %p217 = pneg %p216
      // Predicated region
      $region37: #{tpu_custom_call.1} parent=5 // pred_check
        _
      $region38: #{tpu_custom_call.1} parent=5 // pred_check_branch
        %219 = sbr.rel (%p216) target = $region40
      $region39: #{tpu_custom_call.1} parent=5 // pred_region
        %s220 = ssub.s32 %s18, 1
        %s221 = sand.u32 %s31, 1
        %s222 = scalar_lea.sflag [#allocation3], %s221
        %s223 = sand.u32 %s31, 1
        %s224 = smul.addr %s223, 16
        %s225 = scalar_lea.vmem [#allocation2], %s224
        // Predicated region
        $region41: #{tpu_custom_call.1} parent=39 // pred_check
          %p226 = pneg %p44
        $region42: #{tpu_custom_call.1} parent=39 // pred_check_branch
          %228 = sbr.rel (%p226) target = $region44
        $region43: #{tpu_custom_call.1} parent=39 // pred_region
          %229 = dma.done %s222, 256
        $region44: #{tpu_custom_call.1} parent=39 // pred_fallthru
          _
        // Predicated region
        $region45: #{tpu_custom_call.1} parent=39 // pred_check
          %p230 = pneg %p65
        $region46: #{tpu_custom_call.1} parent=39 // pred_check_branch
          %232 = sbr.rel (%p230) target = $region48
        $region47: #{tpu_custom_call.1} parent=39 // pred_region
          %233 = dma.done [#allocation6], 512
        $region48: #{tpu_custom_call.1} parent=39 // pred_fallthru
          _
        %s234 = sand.u32 %s31, 1
        %s235 = scalar_lea.sflag [#allocation3], %s234
        %s236 = sand.u32 %s31, 1
        %s237 = smul.addr %s236, 16
        %s238 = scalar_lea.vmem [#allocation2], %s237
        %p239 = pneg %p44
        %p240 = pneg %p41
        %p241 = pneg %p65
        %p242 = pneg %p62
        %p243 = pneg %p86
        %p244 = pneg %p83
        %p245 = pneg %p107
        %p246 = pneg %p104
        %p247 = pneg %p128
        %p248 = pneg %p125
        %p249 = pneg %p154
        %p250 = pneg %p151
        %s251 = sand.u32 %s141, 1
        %s252 = scalar_lea.sflag [#allocation4], %s251
        %s253 = sand.u32 %s141, 1
        %s254 = smul.addr %s253, 8
        %s255 = scalar_lea.vmem [#allocation7], %s254
        %v256 = vld [vmem:[%s225] sm:$0xff]
        %v257 = vld [vmem:[%s225 + $0x8] sm:$0xff]
        %v258 = vld [vmem:[#allocation5] sm:$0xff]
        %s259 = scalar_lea.vmem [#allocation5], 8
        %v260 = vld [vmem:[%s259] sm:$0xff]
        %263 = vrot.lane.b32.xlu0 %v256, 126
        %v264 = vpop.permute.xlu0 %263
        %265 = vrot.lane.b32.xlu0 %v257, 126
        %v266 = vpop.permute.xlu0 %265
        %vm267 = vcmask 1031168
        %v268 = vsel %vm267, %v264, %v266
        %vm270 = vcmask 64512
        %v272 = vsel %vm270, %v260, 0
        %274 = vmatprep.subr.mxu0 0.0
        %275 = vmatpush1.msra.mxu0 %v268
        %276 = vmatprep.subr.mxu0 0.0
        %277 = vmatpush1.msra.mxu0 0.0
        %278 = vmatprep.subr.mxu0 0.0
        %279 = vmatpush1.msra.mxu0 0.0
        %280 = vmatprep.subr.mxu0 0.0
        %281 = vmatpush1.msra.mxu0 0.0
        %282 = vmatprep.subr.mxu0 0.0
        %283 = vmatpush1.msra.mxu0 0.0
        %284 = vmatprep.subr.mxu0 0.0
        %285 = vmatpush1.msra.mxu0 0.0
        %286 = vmatprep.subr.mxu0 0.0
        %287 = vmatpush1.msra.mxu0 0.0
        %288 = vmatprep.subr.mxu0 0.0
        %289 = vmatpush1.msra.mxu0 0.0
        %290 = vmatprep.subr.mxu0 0.0
        %291 = vmatpush1.msra.mxu0 0.0
        %292 = vmatprep.subr.mxu0 0.0
        %293 = vmatpush1.msra.mxu0 0.0
        %294 = vmatprep.subr.mxu0 0.0
        %295 = vmatpush1.msra.mxu0 0.0
        %296 = vmatprep.subr.mxu0 0.0
        %297 = vmatpush1.msra.mxu0 0.0
        %298 = vmatprep.subr.mxu0 0.0
        %299 = vmatpush1.msra.mxu0 0.0
        %300 = vmatprep.subr.mxu0 0.0
        %301 = vmatpush1.msra.mxu0 0.0
        %302 = vmatprep.subr.mxu0 0.0
        %303 = vmatpush1.msra.mxu0 0.0
        %304 = vmatprep.subr.mxu0 0.0
        %305 = vmatpush1.msra.mxu0 0.0
        %306 = vmatprep.subr.mxu0 0.0
        %307 = vmatpush1.msra.mxu0 0.0
        %308 = vmatprep.subr.mxu0 0.0
        %309 = vmatpush1.msra.mxu0 0.0
        %310 = vmatprep.subr.mxu0 0.0
        %311 = vmatpush1.msra.mxu0 0.0
        %312 = vmatprep.subr.mxu0 0.0
        %313 = vmatpush1.msra.mxu0 0.0
        %314 = vmatprep.subr.mxu0 0.0
        %315 = vmatpush1.msra.mxu0 0.0
        %316 = vmatprep.subr.mxu0 0.0
        %317 = vmatpush1.msra.mxu0 0.0
        %318 = vmatprep.subr.mxu0 0.0
        %319 = vmatpush1.msra.mxu0 0.0
        %320 = vmatprep.subr.mxu0 0.0
        %321 = vmatpush1.msra.mxu0 0.0
        %322 = vmatprep.subr.mxu0 0.0
        %323 = vmatpush1.msra.mxu0 0.0
        %324 = vmatprep.subr.mxu0 0.0
        %325 = vmatpush1.msra.mxu0 0.0
        %326 = vmatprep.subr.mxu0 0.0
        %327 = vmatpush1.msra.mxu0 0.0
        %328 = vmatprep.subr.mxu0 0.0
        %329 = vmatpush1.msra.mxu0 0.0
        %330 = vmatprep.subr.mxu0 0.0
        %331 = vmatpush1.msra.mxu0 0.0
        %332 = vmatprep.subr.mxu0 0.0
        %333 = vmatpush1.msra.mxu0 0.0
        %334 = vmatprep.subr.mxu0 0.0
        %335 = vmatpush1.msra.mxu0 0.0
        %336 = vmatprep.subr.mxu0 0.0
        %337 = vmatpush1.msra.mxu0 0.0
        %338 = vmatprep.mubr.f32.mxu0 0.0
        %339 = vmatmul.mubr.f32.gmra.mrb[0].mxu0 %v272
        %v340 = vpop.f32.mrb[0].mxu0
        %v341 = vadd.f32 0.0, %v340
        %v342 = vpop.f32.mrb[0].mxu0
        %343 = vdwg.mxu0
        %v345 = vsel %vm270, %v258, 0
        %347 = vmatprep.subr.mxu0 0.0
        %348 = vmatpush1.msra.mxu0 %v256
        %349 = vmatprep.subr.mxu0 0.0
        %350 = vmatpush1.msra.mxu0 0.0
        %351 = vmatprep.subr.mxu0 0.0
        %352 = vmatpush1.msra.mxu0 0.0
        %353 = vmatprep.subr.mxu0 0.0
        %354 = vmatpush1.msra.mxu0 0.0
        %355 = vmatprep.subr.mxu0 0.0
        %356 = vmatpush1.msra.mxu0 0.0
        %357 = vmatprep.subr.mxu0 0.0
        %358 = vmatpush1.msra.mxu0 0.0
        %359 = vmatprep.subr.mxu0 0.0
        %360 = vmatpush1.msra.mxu0 0.0
        %361 = vmatprep.subr.mxu0 0.0
        %362 = vmatpush1.msra.mxu0 0.0
        %363 = vmatprep.subr.mxu0 0.0
        %364 = vmatpush1.msra.mxu0 0.0
        %365 = vmatprep.subr.mxu0 0.0
        %366 = vmatpush1.msra.mxu0 0.0
        %367 = vmatprep.subr.mxu0 0.0
        %368 = vmatpush1.msra.mxu0 0.0
        %369 = vmatprep.subr.mxu0 0.0
        %370 = vmatpush1.msra.mxu0 0.0
        %371 = vmatprep.subr.mxu0 0.0
        %372 = vmatpush1.msra.mxu0 0.0
        %373 = vmatprep.subr.mxu0 0.0
        %374 = vmatpush1.msra.mxu0 0.0
        %375 = vmatprep.subr.mxu0 0.0
        %376 = vmatpush1.msra.mxu0 0.0
        %377 = vmatprep.subr.mxu0 0.0
        %378 = vmatpush1.msra.mxu0 0.0
        %379 = vmatprep.subr.mxu0 0.0
        %380 = vmatpush1.msra.mxu0 0.0
        %381 = vmatprep.subr.mxu0 0.0
        %382 = vmatpush1.msra.mxu0 0.0
        %383 = vmatprep.subr.mxu0 0.0
        %384 = vmatpush1.msra.mxu0 0.0
        %385 = vmatprep.subr.mxu0 0.0
        %386 = vmatpush1.msra.mxu0 0.0
        %387 = vmatprep.subr.mxu0 0.0
        %388 = vmatpush1.msra.mxu0 0.0
        %389 = vmatprep.subr.mxu0 0.0
        %390 = vmatpush1.msra.mxu0 0.0
        %391 = vmatprep.subr.mxu0 0.0
        %392 = vmatpush1.msra.mxu0 0.0
        %393 = vmatprep.subr.mxu0 0.0
        %394 = vmatpush1.msra.mxu0 0.0
        %395 = vmatprep.subr.mxu0 0.0
        %396 = vmatpush1.msra.mxu0 0.0
        %397 = vmatprep.subr.mxu0 0.0
        %398 = vmatpush1.msra.mxu0 0.0
        %399 = vmatprep.subr.mxu0 0.0
        %400 = vmatpush1.msra.mxu0 0.0
        %401 = vmatprep.subr.mxu0 0.0
        %402 = vmatpush1.msra.mxu0 0.0
        %403 = vmatprep.subr.mxu0 0.0
        %404 = vmatpush1.msra.mxu0 0.0
        %405 = vmatprep.subr.mxu0 0.0
        %406 = vmatpush1.msra.mxu0 0.0
        %407 = vmatprep.subr.mxu0 0.0
        %408 = vmatpush1.msra.mxu0 0.0
        %409 = vmatprep.subr.mxu0 0.0
        %410 = vmatpush1.msra.mxu0 0.0
        %411 = vmatprep.mubr.f32.mxu0 0.0
        %412 = vmatmul.mubr.f32.gmra.mrb[0].mxu0 %v345
        %v413 = vpop.f32.mrb[0].mxu0
        %v414 = vadd.f32 %v341, %v413
        %v415 = vpop.f32.mrb[0].mxu0
        %416 = vdwg.mxu0
        %s417 = scalar_lea.vmem [#allocation5], 16
        %v418 = vld [vmem:[%s417] sm:$0xff]
        %419 = vrot.lane.b32.xlu0 %v256, 124
        %v420 = vpop.permute.xlu0 %419
        %421 = vrot.lane.b32.xlu0 %v257, 124
        %v422 = vpop.permute.xlu0 %421
        %vm423 = vcmask 1014784
        %v424 = vsel %vm423, %v420, %v422
        %v427 = vsel %vm270, %v418, 0
        %429 = vmatprep.subr.mxu0 0.0
        %430 = vmatpush1.msra.mxu0 %v424
        %431 = vmatprep.subr.mxu0 0.0
        %432 = vmatpush1.msra.mxu0 0.0
        %433 = vmatprep.subr.mxu0 0.0
        %434 = vmatpush1.msra.mxu0 0.0
        %435 = vmatprep.subr.mxu0 0.0
        %436 = vmatpush1.msra.mxu0 0.0
        %437 = vmatprep.subr.mxu0 0.0
        %438 = vmatpush1.msra.mxu0 0.0
        %439 = vmatprep.subr.mxu0 0.0
        %440 = vmatpush1.msra.mxu0 0.0
        %441 = vmatprep.subr.mxu0 0.0
        %442 = vmatpush1.msra.mxu0 0.0
        %443 = vmatprep.subr.mxu0 0.0
        %444 = vmatpush1.msra.mxu0 0.0
        %445 = vmatprep.subr.mxu0 0.0
        %446 = vmatpush1.msra.mxu0 0.0
        %447 = vmatprep.subr.mxu0 0.0
        %448 = vmatpush1.msra.mxu0 0.0
        %449 = vmatprep.subr.mxu0 0.0
        %450 = vmatpush1.msra.mxu0 0.0
        %451 = vmatprep.subr.mxu0 0.0
        %452 = vmatpush1.msra.mxu0 0.0
        %453 = vmatprep.subr.mxu0 0.0
        %454 = vmatpush1.msra.mxu0 0.0
        %455 = vmatprep.subr.mxu0 0.0
        %456 = vmatpush1.msra.mxu0 0.0
        %457 = vmatprep.subr.mxu0 0.0
        %458 = vmatpush1.msra.mxu0 0.0
        %459 = vmatprep.subr.mxu0 0.0
        %460 = vmatpush1.msra.mxu0 0.0
        %461 = vmatprep.subr.mxu0 0.0
        %462 = vmatpush1.msra.mxu0 0.0
        %463 = vmatprep.subr.mxu0 0.0
        %464 = vmatpush1.msra.mxu0 0.0
        %465 = vmatprep.subr.mxu0 0.0
        %466 = vmatpush1.msra.mxu0 0.0
        %467 = vmatprep.subr.mxu0 0.0
        %468 = vmatpush1.msra.mxu0 0.0
        %469 = vmatprep.subr.mxu0 0.0
        %470 = vmatpush1.msra.mxu0 0.0
        %471 = vmatprep.subr.mxu0 0.0
        %472 = vmatpush1.msra.mxu0 0.0
        %473 = vmatprep.subr.mxu0 0.0
        %474 = vmatpush1.msra.mxu0 0.0
        %475 = vmatprep.subr.mxu0 0.0
        %476 = vmatpush1.msra.mxu0 0.0
        %477 = vmatprep.subr.mxu0 0.0
        %478 = vmatpush1.msra.mxu0 0.0
        %479 = vmatprep.subr.mxu0 0.0
        %480 = vmatpush1.msra.mxu0 0.0
        %481 = vmatprep.subr.mxu0 0.0
        %482 = vmatpush1.msra.mxu0 0.0
        %483 = vmatprep.subr.mxu0 0.0
        %484 = vmatpush1.msra.mxu0 0.0
        %485 = vmatprep.subr.mxu0 0.0
        %486 = vmatpush1.msra.mxu0 0.0
        %487 = vmatprep.subr.mxu0 0.0
        %488 = vmatpush1.msra.mxu0 0.0
        %489 = vmatprep.subr.mxu0 0.0
        %490 = vmatpush1.msra.mxu0 0.0
        %491 = vmatprep.subr.mxu0 0.0
        %492 = vmatpush1.msra.mxu0 0.0
        %493 = vmatprep.mubr.f32.mxu0 0.0
        %494 = vmatmul.mubr.f32.gmra.mrb[0].mxu0 %v427
        %v495 = vpop.f32.mrb[0].mxu0
        %v496 = vadd.f32 0.0, %v495
        %v497 = vpop.f32.mrb[0].mxu0
        %498 = vdwg.mxu0
        %v499 = vadd.f32 %v414, %v496
        %s500 = scalar_lea.vmem [#allocation5], 24
        %v501 = vld [vmem:[%s500] sm:$0xff]
        %s502 = scalar_lea.vmem %s3, 8
        %v503 = vld [vmem:[%s502] sm:$0xff]
        %505 = vset.pattern.permute.xlu0 0
        %506 = vperm.xlu0 %505, %v503
        %v507 = vpop.permute.xlu0 %506
        %v510 = vsel %vm270, %v501, 0
        %512 = vmatprep.subr.mxu0 0.0
        %513 = vmatpush1.msra.mxu0 %v424
        %514 = vmatprep.subr.mxu0 0.0
        %515 = vmatpush1.msra.mxu0 0.0
        %516 = vmatprep.subr.mxu0 0.0
        %517 = vmatpush1.msra.mxu0 0.0
        %518 = vmatprep.subr.mxu0 0.0
        %519 = vmatpush1.msra.mxu0 0.0
        %520 = vmatprep.subr.mxu0 0.0
        %521 = vmatpush1.msra.mxu0 0.0
        %522 = vmatprep.subr.mxu0 0.0
        %523 = vmatpush1.msra.mxu0 0.0
        %524 = vmatprep.subr.mxu0 0.0
        %525 = vmatpush1.msra.mxu0 0.0
        %526 = vmatprep.subr.mxu0 0.0
        %527 = vmatpush1.msra.mxu0 0.0
        %528 = vmatprep.subr.mxu0 0.0
        %529 = vmatpush1.msra.mxu0 0.0
        %530 = vmatprep.subr.mxu0 0.0
        %531 = vmatpush1.msra.mxu0 0.0
        %532 = vmatprep.subr.mxu0 0.0
        %533 = vmatpush1.msra.mxu0 0.0
        %534 = vmatprep.subr.mxu0 0.0
        %535 = vmatpush1.msra.mxu0 0.0
        %536 = vmatprep.subr.mxu0 0.0
        %537 = vmatpush1.msra.mxu0 0.0
        %538 = vmatprep.subr.mxu0 0.0
        %539 = vmatpush1.msra.mxu0 0.0
        %540 = vmatprep.subr.mxu0 0.0
        %541 = vmatpush1.msra.mxu0 0.0
        %542 = vmatprep.subr.mxu0 0.0
        %543 = vmatpush1.msra.mxu0 0.0
        %544 = vmatprep.subr.mxu0 0.0
        %545 = vmatpush1.msra.mxu0 0.0
        %546 = vmatprep.subr.mxu0 0.0
        %547 = vmatpush1.msra.mxu0 0.0
        %548 = vmatprep.subr.mxu0 0.0
        %549 = vmatpush1.msra.mxu0 0.0
        %550 = vmatprep.subr.mxu0 0.0
        %551 = vmatpush1.msra.mxu0 0.0
        %552 = vmatprep.subr.mxu0 0.0
        %553 = vmatpush1.msra.mxu0 0.0
        %554 = vmatprep.subr.mxu0 0.0
        %555 = vmatpush1.msra.mxu0 0.0
        %556 = vmatprep.subr.mxu0 0.0
        %557 = vmatpush1.msra.mxu0 0.0
        %558 = vmatprep.subr.mxu0 0.0
        %559 = vmatpush1.msra.mxu0 0.0
        %560 = vmatprep.subr.mxu0 0.0
        %561 = vmatpush1.msra.mxu0 0.0
        %562 = vmatprep.subr.mxu0 0.0
        %563 = vmatpush1.msra.mxu0 0.0
        %564 = vmatprep.subr.mxu0 0.0
        %565 = vmatpush1.msra.mxu0 0.0
        %566 = vmatprep.subr.mxu0 0.0
        %567 = vmatpush1.msra.mxu0 0.0
        %568 = vmatprep.subr.mxu0 0.0
        %569 = vmatpush1.msra.mxu0 0.0
        %570 = vmatprep.subr.mxu0 0.0
        %571 = vmatpush1.msra.mxu0 0.0
        %572 = vmatprep.subr.mxu0 0.0
        %573 = vmatpush1.msra.mxu0 0.0
        %574 = vmatprep.subr.mxu0 0.0
        %575 = vmatpush1.msra.mxu0 0.0
        %576 = vmatprep.mubr.f32.mxu0 0.0
        %577 = vmatmul.mubr.f32.gmra.mrb[0].mxu0 %v510
        %v578 = vpop.f32.mrb[0].mxu0
        %v579 = vadd.f32 %v507, %v578
        %v580 = vpop.f32.mrb[0].mxu0
        %581 = vdwg.mxu0
        %v582 = vld [vmem:[%s3] sm:$0xff]
        %584 = vset.pattern.permute.xlu0 0
        %585 = vperm.xlu0 %584, %v582
        %v586 = vpop.permute.xlu0 %585
        %v588 = vadd.f32 %v499, %v586
        %v589 = vmax.f32 %v588, 0.0
        %v590 = vld [vmem:[%s4] sm:$0x1]
        %v592 = vlaneseq
        %v593 = vshrl.u32 %v592, 7
        %v594 = vsub.s32 0, %v593
        %v595 = vrot.slane %v590, %v594
        %v597 = vmul.f32 %v589, %v595
        %599 = vrot.lane.b32.xlu0 %v597, 4
        %v600 = vpop.permute.xlu0 %599
        %vm602 = vcmask 31744
        %v603 = vsel %vm602, 0.0, %v600
        %v604 = vld [vmem:[%s2] sm:$0xff]
        %605 = vrot.lane.b32.xlu0 %v597, 2
        %v606 = vpop.permute.xlu0 %605
        %vm608 = vcmask 15360
        %v609 = vsel %vm608, 0.0, %v606
        %s610 = scalar_lea.vmem %s2, 8
        %v611 = vld [vmem:[%s610] sm:$0xff]
        %v613 = vsel %vm270, %v611, 0
        %615 = vmatprep.subr.mxu0 0.0
        %616 = vmatpush1.msra.mxu0 %v609
        %617 = vmatprep.subr.mxu0 0.0
        %618 = vmatpush1.msra.mxu0 0.0
        %619 = vmatprep.subr.mxu0 0.0
        %620 = vmatpush1.msra.mxu0 0.0
        %621 = vmatprep.subr.mxu0 0.0
        %622 = vmatpush1.msra.mxu0 0.0
        %623 = vmatprep.subr.mxu0 0.0
        %624 = vmatpush1.msra.mxu0 0.0
        %625 = vmatprep.subr.mxu0 0.0
        %626 = vmatpush1.msra.mxu0 0.0
        %627 = vmatprep.subr.mxu0 0.0
        %628 = vmatpush1.msra.mxu0 0.0
        %629 = vmatprep.subr.mxu0 0.0
        %630 = vmatpush1.msra.mxu0 0.0
        %631 = vmatprep.subr.mxu0 0.0
        %632 = vmatpush1.msra.mxu0 0.0
        %633 = vmatprep.subr.mxu0 0.0
        %634 = vmatpush1.msra.mxu0 0.0
        %635 = vmatprep.subr.mxu0 0.0
        %636 = vmatpush1.msra.mxu0 0.0
        %637 = vmatprep.subr.mxu0 0.0
        %638 = vmatpush1.msra.mxu0 0.0
        %639 = vmatprep.subr.mxu0 0.0
        %640 = vmatpush1.msra.mxu0 0.0
        %641 = vmatprep.subr.mxu0 0.0
        %642 = vmatpush1.msra.mxu0 0.0
        %643 = vmatprep.subr.mxu0 0.0
        %644 = vmatpush1.msra.mxu0 0.0
        %645 = vmatprep.subr.mxu0 0.0
        %646 = vmatpush1.msra.mxu0 0.0
        %647 = vmatprep.subr.mxu0 0.0
        %648 = vmatpush1.msra.mxu0 0.0
        %649 = vmatprep.subr.mxu0 0.0
        %650 = vmatpush1.msra.mxu0 0.0
        %651 = vmatprep.subr.mxu0 0.0
        %652 = vmatpush1.msra.mxu0 0.0
        %653 = vmatprep.subr.mxu0 0.0
        %654 = vmatpush1.msra.mxu0 0.0
        %655 = vmatprep.subr.mxu0 0.0
        %656 = vmatpush1.msra.mxu0 0.0
        %657 = vmatprep.subr.mxu0 0.0
        %658 = vmatpush1.msra.mxu0 0.0
        %659 = vmatprep.subr.mxu0 0.0
        %660 = vmatpush1.msra.mxu0 0.0
        %661 = vmatprep.subr.mxu0 0.0
        %662 = vmatpush1.msra.mxu0 0.0
        %663 = vmatprep.subr.mxu0 0.0
        %664 = vmatpush1.msra.mxu0 0.0
        %665 = vmatprep.subr.mxu0 0.0
        %666 = vmatpush1.msra.mxu0 0.0
        %667 = vmatprep.subr.mxu0 0.0
        %668 = vmatpush1.msra.mxu0 0.0
        %669 = vmatprep.subr.mxu0 0.0
        %670 = vmatpush1.msra.mxu0 0.0
        %671 = vmatprep.subr.mxu0 0.0
        %672 = vmatpush1.msra.mxu0 0.0
        %673 = vmatprep.subr.mxu0 0.0
        %674 = vmatpush1.msra.mxu0 0.0
        %675 = vmatprep.subr.mxu0 0.0
        %676 = vmatpush1.msra.mxu0 0.0
        %677 = vmatprep.subr.mxu0 0.0
        %678 = vmatpush1.msra.mxu0 0.0
        %679 = vmatprep.mubr.f32.mxu0 0.0
        %680 = vmatmul.mubr.f32.gmra.mrb[0].mxu0 %v613
        %v681 = vpop.f32.mrb[0].mxu0
        %v682 = vadd.f32 0.0, %v681
        %v683 = vpop.f32.mrb[0].mxu0
        %684 = vdwg.mxu0
        %v686 = vsel %vm270, %v604, 0
        %688 = vmatprep.subr.mxu0 0.0
        %689 = vmatpush1.msra.mxu0 %v603
        %690 = vmatprep.subr.mxu0 0.0
        %691 = vmatpush1.msra.mxu0 0.0
        %692 = vmatprep.subr.mxu0 0.0
        %693 = vmatpush1.msra.mxu0 0.0
        %694 = vmatprep.subr.mxu0 0.0
        %695 = vmatpush1.msra.mxu0 0.0
        %696 = vmatprep.subr.mxu0 0.0
        %697 = vmatpush1.msra.mxu0 0.0
        %698 = vmatprep.subr.mxu0 0.0
        %699 = vmatpush1.msra.mxu0 0.0
        %700 = vmatprep.subr.mxu0 0.0
        %701 = vmatpush1.msra.mxu0 0.0
        %702 = vmatprep.subr.mxu0 0.0
        %703 = vmatpush1.msra.mxu0 0.0
        %704 = vmatprep.subr.mxu0 0.0
        %705 = vmatpush1.msra.mxu0 0.0
        %706 = vmatprep.subr.mxu0 0.0
        %707 = vmatpush1.msra.mxu0 0.0
        %708 = vmatprep.subr.mxu0 0.0
        %709 = vmatpush1.msra.mxu0 0.0
        %710 = vmatprep.subr.mxu0 0.0
        %711 = vmatpush1.msra.mxu0 0.0
        %712 = vmatprep.subr.mxu0 0.0
        %713 = vmatpush1.msra.mxu0 0.0
        %714 = vmatprep.subr.mxu0 0.0
        %715 = vmatpush1.msra.mxu0 0.0
        %716 = vmatprep.subr.mxu0 0.0
        %717 = vmatpush1.msra.mxu0 0.0
        %718 = vmatprep.subr.mxu0 0.0
        %719 = vmatpush1.msra.mxu0 0.0
        %720 = vmatprep.subr.mxu0 0.0
        %721 = vmatpush1.msra.mxu0 0.0
        %722 = vmatprep.subr.mxu0 0.0
        %723 = vmatpush1.msra.mxu0 0.0
        %724 = vmatprep.subr.mxu0 0.0
        %725 = vmatpush1.msra.mxu0 0.0
        %726 = vmatprep.subr.mxu0 0.0
        %727 = vmatpush1.msra.mxu0 0.0
        %728 = vmatprep.subr.mxu0 0.0
        %729 = vmatpush1.msra.mxu0 0.0
        %730 = vmatprep.subr.mxu0 0.0
        %731 = vmatpush1.msra.mxu0 0.0
        %732 = vmatprep.subr.mxu0 0.0
        %733 = vmatpush1.msra.mxu0 0.0
        %734 = vmatprep.subr.mxu0 0.0
        %735 = vmatpush1.msra.mxu0 0.0
        %736 = vmatprep.subr.mxu0 0.0
        %737 = vmatpush1.msra.mxu0 0.0
        %738 = vmatprep.subr.mxu0 0.0
        %739 = vmatpush1.msra.mxu0 0.0
        %740 = vmatprep.subr.mxu0 0.0
        %741 = vmatpush1.msra.mxu0 0.0
        %742 = vmatprep.subr.mxu0 0.0
        %743 = vmatpush1.msra.mxu0 0.0
        %744 = vmatprep.subr.mxu0 0.0
        %745 = vmatpush1.msra.mxu0 0.0
        %746 = vmatprep.subr.mxu0 0.0
        %747 = vmatpush1.msra.mxu0 0.0
        %748 = vmatprep.subr.mxu0 0.0
        %749 = vmatpush1.msra.mxu0 0.0
        %750 = vmatprep.subr.mxu0 0.0
        %751 = vmatpush1.msra.mxu0 0.0
        %752 = vmatprep.mubr.f32.mxu0 0.0
        %753 = vmatmul.mubr.f32.gmra.mrb[0].mxu0 %v686
        %v754 = vpop.f32.mrb[0].mxu0
        %v755 = vadd.f32 %v682, %v754
        %v756 = vpop.f32.mrb[0].mxu0
        %757 = vdwg.mxu0
        %s758 = scalar_lea.vmem %s2, 16
        %v759 = vld [vmem:[%s758] sm:$0xff]
        %v761 = vsel %vm270, %v759, 0
        %763 = vmatprep.subr.mxu0 0.0
        %764 = vmatpush1.msra.mxu0 %v597
        %765 = vmatprep.subr.mxu0 0.0
        %766 = vmatpush1.msra.mxu0 0.0
        %767 = vmatprep.subr.mxu0 0.0
        %768 = vmatpush1.msra.mxu0 0.0
        %769 = vmatprep.subr.mxu0 0.0
        %770 = vmatpush1.msra.mxu0 0.0
        %771 = vmatprep.subr.mxu0 0.0
        %772 = vmatpush1.msra.mxu0 0.0
        %773 = vmatprep.subr.mxu0 0.0
        %774 = vmatpush1.msra.mxu0 0.0
        %775 = vmatprep.subr.mxu0 0.0
        %776 = vmatpush1.msra.mxu0 0.0
        %777 = vmatprep.subr.mxu0 0.0
        %778 = vmatpush1.msra.mxu0 0.0
        %779 = vmatprep.subr.mxu0 0.0
        %780 = vmatpush1.msra.mxu0 0.0
        %781 = vmatprep.subr.mxu0 0.0
        %782 = vmatpush1.msra.mxu0 0.0
        %783 = vmatprep.subr.mxu0 0.0
        %784 = vmatpush1.msra.mxu0 0.0
        %785 = vmatprep.subr.mxu0 0.0
        %786 = vmatpush1.msra.mxu0 0.0
        %787 = vmatprep.subr.mxu0 0.0
        %788 = vmatpush1.msra.mxu0 0.0
        %789 = vmatprep.subr.mxu0 0.0
        %790 = vmatpush1.msra.mxu0 0.0
        %791 = vmatprep.subr.mxu0 0.0
        %792 = vmatpush1.msra.mxu0 0.0
        %793 = vmatprep.subr.mxu0 0.0
        %794 = vmatpush1.msra.mxu0 0.0
        %795 = vmatprep.subr.mxu0 0.0
        %796 = vmatpush1.msra.mxu0 0.0
        %797 = vmatprep.subr.mxu0 0.0
        %798 = vmatpush1.msra.mxu0 0.0
        %799 = vmatprep.subr.mxu0 0.0
        %800 = vmatpush1.msra.mxu0 0.0
        %801 = vmatprep.subr.mxu0 0.0
        %802 = vmatpush1.msra.mxu0 0.0
        %803 = vmatprep.subr.mxu0 0.0
        %804 = vmatpush1.msra.mxu0 0.0
        %805 = vmatprep.subr.mxu0 0.0
        %806 = vmatpush1.msra.mxu0 0.0
        %807 = vmatprep.subr.mxu0 0.0
        %808 = vmatpush1.msra.mxu0 0.0
        %809 = vmatprep.subr.mxu0 0.0
        %810 = vmatpush1.msra.mxu0 0.0
        %811 = vmatprep.subr.mxu0 0.0
        %812 = vmatpush1.msra.mxu0 0.0
        %813 = vmatprep.subr.mxu0 0.0
        %814 = vmatpush1.msra.mxu0 0.0
        %815 = vmatprep.subr.mxu0 0.0
        %816 = vmatpush1.msra.mxu0 0.0
        %817 = vmatprep.subr.mxu0 0.0
        %818 = vmatpush1.msra.mxu0 0.0
        %819 = vmatprep.subr.mxu0 0.0
        %820 = vmatpush1.msra.mxu0 0.0
        %821 = vmatprep.subr.mxu0 0.0
        %822 = vmatpush1.msra.mxu0 0.0
        %823 = vmatprep.subr.mxu0 0.0
        %824 = vmatpush1.msra.mxu0 0.0
        %825 = vmatprep.subr.mxu0 0.0
        %826 = vmatpush1.msra.mxu0 0.0
        %827 = vmatprep.mubr.f32.mxu0 0.0
        %828 = vmatmul.mubr.f32.gmra.mrb[0].mxu0 %v761
        %v829 = vpop.f32.mrb[0].mxu0
        %v830 = vadd.f32 0.0, %v829
        %v831 = vpop.f32.mrb[0].mxu0
        %832 = vdwg.mxu0
        %v833 = vadd.f32 %v755, %v830
        %s834 = scalar_lea.vmem %s3, 16
        %v835 = vld [vmem:[%s834] sm:$0xff]
        %837 = vset.pattern.permute.xlu0 0
        %838 = vperm.xlu0 %837, %v835
        %v839 = vpop.permute.xlu0 %838
        %v841 = vadd.f32 %v833, %v839
        %v842 = vmax.f32 %v841, 0.0
        %v843 = vadd.f32 %v842, %v579
        %v844 = vmax.f32 %v843, 0.0
        %845 = vst [vmem:[%s255] sm:$0xff] %v844
        %s846 = sand.u32 %s141, 1
        %s847 = scalar_lea.sflag [#allocation4], %s846
        %s848 = sand.u32 %s141, 1
        %s849 = smul.addr %s848, 8
        %s850 = scalar_lea.vmem [#allocation7], %s849
        // Predicated region
        $region49: #{tpu_custom_call.1} parent=39 // pred_check
          %p851 = pneg %p151
        $region50: #{tpu_custom_call.1} parent=39 // pred_check_branch
          %853 = sbr.rel (%p851) target = $region52
        $region51: #{tpu_custom_call.1} parent=39 // pred_region
          %s855 = ssub.s32 128, 128
          %856 = vsyncadd %s847, %s855
          %s857 = smul.addr %s23, 128
          %s858 = scalar_lea.hbm %s5, %s857
          %s860 = sshll.u32 %s850, 4
          %s861 = int_to_ptr.vmem [resolvable:$true] %s860
          %863 = dma.vmem_to_hbm [thread:$0]  %s861, 128, %s858, %s847
        $region52: #{tpu_custom_call.1} parent=39 // pred_fallthru
          _
      $region40: #{tpu_custom_call.1} parent=5 // pred_fallthru
        _
      %p864 = scmp.le.s32.totalorder 2, %s18
      // Predicated region
      $region53: #{tpu_custom_call.1} parent=5 // pred_check
        %p865 = pneg %p864
      $region54: #{tpu_custom_call.1} parent=5 // pred_check_branch
        %867 = sbr.rel (%p865) target = $region56
      $region55: #{tpu_custom_call.1} parent=5 // pred_region
        %s868 = ssub.s32 %s18, 2
        // Predicated region
        $region57: #{tpu_custom_call.1} parent=55 // pred_check
          %p869 = pneg %p157
        $region58: #{tpu_custom_call.1} parent=55 // pred_check_branch
          %871 = sbr.rel (%p869) target = $region60
        $region59: #{tpu_custom_call.1} parent=55 // pred_region
          %s872 = sand.u32 %s142, 1
          %s873 = scalar_lea.sflag [#allocation4], %s872
          %s874 = sand.u32 %s142, 1
          %s875 = smul.addr %s874, 8
          %s876 = scalar_lea.vmem [#allocation7], %s875
          %877 = dma.done %s873, 128
        $region60: #{tpu_custom_call.1} parent=55 // pred_fallthru
          _
      $region56: #{tpu_custom_call.1} parent=5 // pred_fallthru
        _
    $region6: #{tpu_custom_call.1} parent=1 // loop_footer
      %s22 = sadd.s32 1, %s18
    $region7: #{tpu_custom_call.1} parent=1 // loop_footer_branch
      %17 = sbr.rel target = $region3
    $region8: #{tpu_custom_call.1} parent=1 // loop_exit
      _
    %878 = vsyncpa [#allocation3], 1
    %s879 = scalar_lea.sflag [#allocation3], 1
    %880 = vsyncpa %s879, 1
    %881 = vsyncpa [#allocation6], 1
    %882 = vsyncpa [#allocation4], 1
    %s883 = scalar_lea.sflag [#allocation4], 1
    %884 = vsyncpa %s883, 1

</llo_original>
